<compile_context>
chip_gen: v7x
topology: tpu7x:2x2x1
jax: 0.10.0
libtpu: 0.0.40
codegen_flags: <defaults>
</compile_context>

<pallas_src>
import jax
import jax.numpy as jnp
from jax.experimental import pallas as pl
from jax.experimental.pallas import tpu as pltpu


def _make_moments_kernel(kb, rows_rem):
    """Kernel accumulating per-lane sum and sum-of-squares over the row axis.

    kb:       number of reduction steps (grid axis 2 extent).
    rows_rem: valid rows in the last (ragged) block, or None if no masking needed.
    """
    need_mask = rows_rem is not None

    def kernel(x_ref, shift_ref, sum_ref, sumsq_ref):
        k = pl.program_id(2)

        @pl.when(k == 0)
        def _():
            sum_ref[...] = jnp.zeros_like(sum_ref)
            sumsq_ref[...] = jnp.zeros_like(sumsq_ref)

        # (TB, TR, TL) f32, shifted per output lane (variance is shift-invariant).
        x = x_ref[...].astype(jnp.float32) - shift_ref[...]

        def accum(y):
            sum_ref[...] += jnp.sum(y, axis=1, keepdims=True)       # (TB, 1, TL)
            sumsq_ref[...] += jnp.sum(y * y, axis=1, keepdims=True)  # (TB, 1, TL)

        if need_mask:
            # Only the final reduction step can read past the true row extent;
            # gate the mask there so every other step stays pure sum/sumsq.
            @pl.when(k == kb - 1)
            def _():
                row = jax.lax.broadcasted_iota(jnp.int32, x.shape, 1)
                accum(jnp.where(row < rows_rem, x, 0.0))

            @pl.when(k < kb - 1)
            def _():
                accum(x)
        else:
            accum(x)

    return kernel


def var_dim12(x):
    """Biased variance over dims (1, 2) of an NCHW tensor via a Pallas TPU kernel."""
    B, C, H, W = x.shape
    N = C * H
    itemsize = jnp.dtype(x.dtype).itemsize
    sub = {4: 8, 2: 16, 1: 32}.get(itemsize, 8)          # sublane quantum

    xr = x.reshape(B, N, W)

    # ---- zero-copy lane packing (no jnp.pad: only pack when it needs no padding) ----
    if W < 128 and (128 % W) == 0 and (N % (128 // W)) == 0:
        G = 128 // W
        R = N // G
        L = G * W                                         # == 128
        xr = xr.reshape(B, R, L)                          # pure reshape, contiguous
    else:
        G, R, L = 1, N, W

    # Per-output-lane shift to avoid E[x^2] - mean^2 cancellation.
    shift_w = x[:, 0, 0, :].astype(jnp.float32)           # (B, W)
    shift = jnp.tile(shift_w, (1, G)) if G > 1 else shift_w
    shift = shift.reshape(B, 1, L)

    # ---- lane tile ----
    if L <= 1024 or (L % 128) != 0:
        TL = L                                            # full extent (exempt from 128 rule)
    else:
        TL = next(t for t in (512, 256, 128) if L % t == 0)
    lane_tiles = L // TL
    TL_pad = -(-TL // 128) * 128                          # padded VMEM lane width

    # ---- reduction-row tile: target ~4 MiB of (VMEM-layout) input per grid step ----
    TARGET = 4 * 1024 * 1024
    max_rows = max(sub, TARGET // (TL_pad * itemsize))
    if R <= max_rows:
        TR = R                                            # full extent, single reduction step
        Kb = 1
    else:
        TR = max(sub, (max_rows // sub) * sub)
        Kb = -(-R // TR)
    rows_rem = (R % TR) if (R % TR) else None             # valid rows in the last block
    TR_pad = -(-TR // sub) * sub

    # ---- batch tile: fill the block budget when R is small; keep megacore occupied ----
    tb_budget = max(1, TARGET // (TR_pad * TL_pad * itemsize))
    cap = tb_budget
    if lane_tiles == 1 and B > 1:
        cap = min(cap, max(1, B // 2))                    # >= 2 parallel programs for v7x
    TB = 1
    for d in range(1, B + 1):
        if B % d == 0 and d <= cap:
            TB = d

    kernel = _make_moments_kernel(Kb, rows_rem)
    out_sd = jax.ShapeDtypeStruct((B, 1, L), jnp.float32)

    s, sq = pl.pallas_call(
        kernel,
        out_shape=(out_sd, out_sd),
        grid_spec=pltpu.PrefetchScalarGridSpec(
            num_scalar_prefetch=0,
            grid=(B // TB, lane_tiles, Kb),
            in_specs=[
                pl.BlockSpec((TB, TR, TL), lambda b, j, k: (b, k, j)),
                pl.BlockSpec((TB, 1, TL), lambda b, j, k: (b, 0, j)),
            ],
            out_specs=[
                pl.BlockSpec((TB, 1, TL), lambda b, j, k: (b, 0, j)),
                pl.BlockSpec((TB, 1, TL), lambda b, j, k: (b, 0, j)),
            ],
        ),
        compiler_params=pltpu.CompilerParams(
            dimension_semantics=("parallel", "parallel", "arbitrary"),
            vmem_limit_bytes=32 * 1024 * 1024,
        ),
        cost_estimate=pl.CostEstimate(
            flops=4 * B * R * L,
            transcendentals=0,
            bytes_accessed=B * R * L * itemsize + 3 * B * L * 4,
        ),
    )(xr, shift)

    # Tiny finalize in plain JAX: fold lane groups, then var = E[y^2] - (E[y])^2.
    s = s[:, 0, :]
    sq = sq[:, 0, :]
    if G > 1:
        s = s.reshape(B, G, W).sum(axis=1)
        sq = sq.reshape(B, G, W).sum(axis=1)

    inv_n = jnp.float32(1.0 / N)
    mean_y = s * inv_n
    var = jnp.maximum(sq * inv_n - mean_y * mean_y, 0.0)
    out_dtype = x.dtype if jnp.issubdtype(x.dtype, jnp.floating) else jnp.float32
    return var.astype(out_dtype)


if __name__ == "__main__":
    key = jax.random.PRNGKey(0)
    B, C, H, W = 2, 4, 16, 16
    x = jax.random.normal(key, (B, C, H, W), dtype=jnp.float32)

    y = jax.jit(var_dim12)(x)
    y = jax.block_until_ready(y)

    # Reference: biased variance over dims (1, 2).
    y_ref = jnp.var(x, axis=(1, 2))
    assert y.shape == (B, W), y.shape
    assert jnp.allclose(y, y_ref, atol=1e-5, rtol=1e-5), (
        float(jnp.max(jnp.abs(y - y_ref))))

    print("KERNEL_OK")
</pallas_src>

<mosaic_0001>
module attributes {stable_mosaic.version = 11 : i64} {
  func.func @kernel(%arg0: i32, %arg1: i32, %arg2: i32, %arg3: memref<1x8x128xf32, #tpu.memory_space<vmem>>, %arg4: memref<1x1x128xf32, #tpu.memory_space<vmem>>, %arg5: memref<1x1x128xf32, #tpu.memory_space<vmem>>, %arg6: memref<1x1x128xf32, #tpu.memory_space<vmem>>) attributes {dimension_semantics = [#tpu.dimension_semantics<parallel>, #tpu.dimension_semantics<parallel>, #tpu.dimension_semantics<arbitrary>], iteration_bounds = array<i64: 2, 1, 1>, scalar_prefetch = 0 : i64, scratch_operands = 0 : i64, tpu.core_type = #tpu.core_type<tc>, window_params = [{transform_indices = @transform_0, window_bounds = array<i64: 1, 8, 128>}, {transform_indices = @transform_1, window_bounds = array<i64: 1, 1, 128>}, {transform_indices = @transform_2, window_bounds = array<i64: 1, 1, 128>}, {transform_indices = @transform_3, window_bounds = array<i64: 1, 1, 128>}]} {
    %c0_i32 = arith.constant 0 : i32
    %0 = arith.cmpi eq, %arg2, %c0_i32 : i32
    %1 = arith.extui %0 : i1 to i32
    %c0_i32_0 = arith.constant 0 : i32
    %2 = arith.cmpi ne, %1, %c0_i32_0 : i32
    scf.if %2 {
      %cst_19 = arith.constant 0.000000e+00 : f32
      %18 = vector.broadcast %cst_19 : f32 to vector<1x1x128xf32>
      %c0_20 = arith.constant 0 : index
      %c0_21 = arith.constant 0 : index
      %c0_22 = arith.constant 0 : index
      %19 = vector.load %arg5[%c0_20, %c0_21, %c0_22] : memref<1x1x128xf32, #tpu.memory_space<vmem>>, vector<1x1x128xf32>
      tpu.vector_store %arg5[%c0_20, %c0_21, %c0_22], %18 {strides = array<i32>} : memref<1x1x128xf32, #tpu.memory_space<vmem>>, vector<1x1x128xf32>,
      %cst_23 = arith.constant 0.000000e+00 : f32
      %20 = vector.broadcast %cst_23 : f32 to vector<1x1x128xf32>
      %c0_24 = arith.constant 0 : index
      %c0_25 = arith.constant 0 : index
      %c0_26 = arith.constant 0 : index
      %21 = vector.load %arg6[%c0_24, %c0_25, %c0_26] : memref<1x1x128xf32, #tpu.memory_space<vmem>>, vector<1x1x128xf32>
      tpu.vector_store %arg6[%c0_24, %c0_25, %c0_26], %20 {strides = array<i32>} : memref<1x1x128xf32, #tpu.memory_space<vmem>>, vector<1x1x128xf32>,
    } else {
    }
    %c0 = arith.constant 0 : index
    %c0_1 = arith.constant 0 : index
    %c0_2 = arith.constant 0 : index
    %3 = vector.load %arg3[%c0, %c0_1, %c0_2] : memref<1x8x128xf32, #tpu.memory_space<vmem>>, vector<1x8x128xf32>
    %c0_3 = arith.constant 0 : index
    %c0_4 = arith.constant 0 : index
    %c0_5 = arith.constant 0 : index
    %4 = vector.load %arg4[%c0_3, %c0_4, %c0_5] : memref<1x1x128xf32, #tpu.memory_space<vmem>>, vector<1x1x128xf32>
    %5 = vector.broadcast %4 : vector<1x1x128xf32> to vector<1x8x128xf32>
    %6 = arith.subf %3, %5 : vector<1x8x128xf32>
    %c0_6 = arith.constant 0 : index
    %c0_7 = arith.constant 0 : index
    %c0_8 = arith.constant 0 : index
    %7 = vector.load %arg5[%c0_6, %c0_7, %c0_8] : memref<1x1x128xf32, #tpu.memory_space<vmem>>, vector<1x1x128xf32>
    %cst = arith.constant dense<0.000000e+00> : vector<1x128xf32>
    %8 = vector.multi_reduction <add>, %6, %cst [1] : vector<1x8x128xf32> to vector<1x128xf32>
    %9 = vector.shape_cast %8 : vector<1x128xf32> to vector<1x1x128xf32>
    %10 = arith.addf %7, %9 : vector<1x1x128xf32>
    %c0_9 = arith.constant 0 : index
    %c0_10 = arith.constant 0 : index
    %c0_11 = arith.constant 0 : index
    %11 = vector.load %arg5[%c0_9, %c0_10, %c0_11] : memref<1x1x128xf32, #tpu.memory_space<vmem>>, vector<1x1x128xf32>
    tpu.vector_store %arg5[%c0_9, %c0_10, %c0_11], %10 {strides = array<i32>} : memref<1x1x128xf32, #tpu.memory_space<vmem>>, vector<1x1x128xf32>,
    %c0_12 = arith.constant 0 : index
    %c0_13 = arith.constant 0 : index
    %c0_14 = arith.constant 0 : index
    %12 = vector.load %arg6[%c0_12, %c0_13, %c0_14] : memref<1x1x128xf32, #tpu.memory_space<vmem>>, vector<1x1x128xf32>
    %13 = arith.mulf %6, %6 : vector<1x8x128xf32>
    %cst_15 = arith.constant dense<0.000000e+00> : vector<1x128xf32>
    %14 = vector.multi_reduction <add>, %13, %cst_15 [1] : vector<1x8x128xf32> to vector<1x128xf32>
    %15 = vector.shape_cast %14 : vector<1x128xf32> to vector<1x1x128xf32>
    %16 = arith.addf %12, %15 : vector<1x1x128xf32>
    %c0_16 = arith.constant 0 : index
    %c0_17 = arith.constant 0 : index
    %c0_18 = arith.constant 0 : index
    %17 = vector.load %arg6[%c0_16, %c0_17, %c0_18] : memref<1x1x128xf32, #tpu.memory_space<vmem>>, vector<1x1x128xf32>
    tpu.vector_store %arg6[%c0_16, %c0_17, %c0_18], %16 {strides = array<i32>} : memref<1x1x128xf32, #tpu.memory_space<vmem>>, vector<1x1x128xf32>,
    return
  }
  func.func @transform_0(%arg0: i32, %arg1: i32, %arg2: i32) -> (i32, i32, i32) {
    %c0_i32 = arith.constant 0 : i32
    return %arg0, %arg2, %arg1 : i32, i32, i32
  }
  func.func @transform_1(%arg0: i32, %arg1: i32, %arg2: i32) -> (i32, i32, i32) {
    %c0_i32 = arith.constant 0 : i32
    %c0_i32_0 = arith.constant 0 : i32
    return %arg0, %c0_i32, %arg1 : i32, i32, i32
  }
  func.func @transform_2(%arg0: i32, %arg1: i32, %arg2: i32) -> (i32, i32, i32) {
    %c0_i32 = arith.constant 0 : i32
    %c0_i32_0 = arith.constant 0 : i32
    return %arg0, %c0_i32, %arg1 : i32, i32, i32
  }
  func.func @transform_3(%arg0: i32, %arg1: i32, %arg2: i32) -> (i32, i32, i32) {
    %c0_i32 = arith.constant 0 : i32
    %c0_i32_0 = arith.constant 0 : i32
    return %arg0, %c0_i32, %arg1 : i32, i32, i32
  }
}

</mosaic_0001>

<llo_original>
// kernel: squeeze.4
$region0: #{squeeze.4}
  %s0 = inlined_call_operand.vmem [shape: f32[2,128], index: 0, kind: input, shape index: {}]
  %s1 = inlined_call_operand.vmem [shape: f32[2,8,16], index: 1, kind: output, shape index: {}]
  $region1: #{squeeze.4} parent=0
    #allocation0 [shape = 'u8[4096]{0}', space=vmem, size = 0x1000, scoped, tag = 'scoped mem for input reshape']
    %s3 = sshllo.u32 0, 2
    %v4 = vld [vmem:[%s0] sm:%s3]
    %5 = vst [vmem:[#allocation0] sm:%s3] %v4
    %v6 = vld [vmem:[#allocation0] sm:$0x3]
    %vm7 = vcmask 130048
    %8 = vst.msk [vmem:[%s1] ss:$8 sm:$0x3] %vm7, %v6
    %v9 = vld [vmem:[#allocation0] sm:$0x3]
    %10 = vrot.lane.b32.xlu0 %v9, 112
    %v11 = vpop.permute.xlu0 %10
    %vm12 = vcmask 130048
    %s13 = scalar_lea.vmem %s1, 1
    %14 = vst.msk [vmem:[%s13] ss:$8 sm:$0x3] %vm12, %v11
    %v15 = vld [vmem:[#allocation0] sm:$0x3]
    %16 = vrot.lane.b32.xlu0 %v15, 96
    %v17 = vpop.permute.xlu0 %16
    %vm18 = vcmask 130048
    %s19 = scalar_lea.vmem %s1, 2
    %20 = vst.msk [vmem:[%s19] ss:$8 sm:$0x3] %vm18, %v17
    %v21 = vld [vmem:[#allocation0] sm:$0x3]
    %22 = vrot.lane.b32.xlu0 %v21, 80
    %v23 = vpop.permute.xlu0 %22
    %vm24 = vcmask 130048
    %s25 = scalar_lea.vmem %s1, 3
    %26 = vst.msk [vmem:[%s25] ss:$8 sm:$0x3] %vm24, %v23
    %v27 = vld [vmem:[#allocation0] sm:$0x3]
    %28 = vrot.lane.b32.xlu0 %v27, 64
    %v29 = vpop.permute.xlu0 %28
    %vm30 = vcmask 130048
    %s31 = scalar_lea.vmem %s1, 4
    %32 = vst.msk [vmem:[%s31] ss:$8 sm:$0x3] %vm30, %v29
    %v33 = vld [vmem:[#allocation0] sm:$0x3]
    %34 = vrot.lane.b32.xlu0 %v33, 48
    %v35 = vpop.permute.xlu0 %34
    %vm36 = vcmask 130048
    %s37 = scalar_lea.vmem %s1, 5
    %38 = vst.msk [vmem:[%s37] ss:$8 sm:$0x3] %vm36, %v35
    %v39 = vld [vmem:[#allocation0] sm:$0x3]
    %40 = vrot.lane.b32.xlu0 %v39, 32
    %v41 = vpop.permute.xlu0 %40
    %vm42 = vcmask 130048
    %s43 = scalar_lea.vmem %s1, 6
    %44 = vst.msk [vmem:[%s43] ss:$8 sm:$0x3] %vm42, %v41
    %v45 = vld [vmem:[#allocation0] sm:$0x3]
    %46 = vrot.lane.b32.xlu0 %v45, 16
    %v47 = vpop.permute.xlu0 %46
    %vm48 = vcmask 130048
    %s49 = scalar_lea.vmem %s1, 7
    %50 = vst.msk [vmem:[%s49] ss:$8 sm:$0x3] %vm48, %v47

// kernel: var_dim12.1
$region0: #{var_dim12.1}
  #allocation0 [shape = 'u32[]', space=smem, size = 0x4, offset = 0x4, fixed_abs, tag = 'smem constant byte address 0x4 - core index']
  #allocation1 [shape = 'u32[144,128]{1,0:T(1,128)}', space=vmem, size = 0x12000, scoped, tag = 'internal scratch']
  %s0 = inlined_call_operand.vmem [shape: f32[2,8,128], index: 0, kind: input, shape index: {}]
  %s1 = inlined_call_operand.vmem [shape: f32[2,1,128], index: 1, kind: input, shape index: {}]
  %s2 = inlined_call_operand.vmem [shape: f32[2,1,128], index: 2, kind: output, shape index: {0}]
  %s3 = inlined_call_operand.vmem [shape: f32[2,1,128], index: 3, kind: output, shape index: {1}]
  %4 = xla_tuple %s2, %s3
  %s5 = sld [smem:[#allocation0]]
  $region53: #{var_dim12.1} parent=0
    _
  %s7 = ssub.s32 1, %s5
  %s8 = scalar_select 0, %s7, %s5
  loop: start=0, step=1, limit=4
  $region2: #{var_dim12.1} parent=0 // loop_pre_header
    _
  $region3: #{var_dim12.1} parent=0 // loop_header
    %s10 = sphi 0, %s14
    %p11 = scmp.ge.s32.totalorder %s10, 4
    %s17 = sphi 0, %s36
    %s18 = sphi 0, %s32
    %s19 = sphi 0, %s28
    %s20 = sphi 0, %s17
    %s21 = sphi 0, %s18
    %s22 = sphi 0, %s19
    %s23 = sphi 0, %s20
    %s24 = sphi 0, %s21
    %s25 = sphi 0, %s22
    %s43 = sphi 0, %s45
    %s46 = sphi 0, %s43
    %s47 = sphi 0, %s46
    %s63 = sphi 0, %s47
    %s71 = sphi 0, %s73
    %s74 = sphi 0, %s71
    %s75 = sphi 0, %s74
    %s91 = sphi 0, %s75
    %s99 = sphi 0, %s101
    %s102 = sphi 0, %s99
    %s103 = sphi 0, %s102
    %s119 = sphi 0, %s103
    %s127 = sphi 0, %s129
    %s130 = sphi 0, %s127
    %s131 = sphi 0, %s130
    %s147 = sphi 0, %s131
  $region4: #{var_dim12.1} parent=0 // loop_header_branch
    %13 = sbr.rel (%p11) target = $region8
  $region5: #{var_dim12.1} parent=0 // loop_body
    %s15 = ssub.s32 %s10, 1
    %s16 = ssub.s32 %s10, 2
    %s26 = sadd.s32 1, %s19
    %p27 = scmp.ge.s32.totalorder %s26, 1
    %s28 = scalar_select %p27, 0, %s26
    %s29 = sadd.s32 1, %s18
    %s30 = scalar_select %p27, %s29, %s18
    %p31 = scmp.ge.s32.totalorder %s30, 1
    %s32 = scalar_select %p31, 0, %s30
    %s33 = sadd.s32 1, %s17
    %s34 = scalar_select %p31, %s33, %s17
    %p35 = scmp.ge.s32.totalorder %s34, 2
    %s36 = scalar_select %p35, 0, %s34
    %s37 = ssub.s32 %s17, %s36
    %s38 = ssub.s32 %s19, %s28
    %s39 = sor.u32 %s37, %s38
    %s40 = ssub.s32 %s18, %s32
    %s41 = sor.u32 %s39, %s40
    %p42 = scmp.eq.s32.totalorder %s41, 0
    %s44 = sadd.s32 %s43, 1
    %s45 = scalar_select %p42, %s43, %s44
    %p48 = pneg %p42
    %p49 = scmp.eq.s32.totalorder %s10, 1
    %p50 = por %p48, %p49
    %p51 = scmp.ne.s32.totalorder %s43, %s46
    %p52 = scmp.eq.s32.totalorder %s10, 0
    %p53 = por %p51, %p52
    %p54 = scmp.ne.s32.totalorder %s43, %s46
    %p55 = scmp.eq.s32.totalorder %s15, 1
    %p56 = por %p54, %p55
    %p57 = scmp.ne.s32.totalorder %s46, %s47
    %p58 = scmp.eq.s32.totalorder %s15, 0
    %p59 = por %p57, %p58
    %p60 = scmp.ne.s32.totalorder %s46, %s47
    %p61 = scmp.eq.s32.totalorder %s16, 1
    %p62 = por %p60, %p61
    %p64 = scmp.ne.s32.totalorder %s47, %s63
    %p65 = scmp.eq.s32.totalorder %s16, 0
    %p66 = por %p64, %p65
    %s67 = ssub.s32 %s17, %s36
    %s68 = ssub.s32 %s18, %s32
    %s69 = sor.u32 %s67, %s68
    %p70 = scmp.eq.s32.totalorder %s69, 0
    %s72 = sadd.s32 %s71, 1
    %s73 = scalar_select %p70, %s71, %s72
    %p76 = pneg %p70
    %p77 = scmp.eq.s32.totalorder %s10, 1
    %p78 = por %p76, %p77
    %p79 = scmp.ne.s32.totalorder %s71, %s74
    %p80 = scmp.eq.s32.totalorder %s10, 0
    %p81 = por %p79, %p80
    %p82 = scmp.ne.s32.totalorder %s71, %s74
    %p83 = scmp.eq.s32.totalorder %s15, 1
    %p84 = por %p82, %p83
    %p85 = scmp.ne.s32.totalorder %s74, %s75
    %p86 = scmp.eq.s32.totalorder %s15, 0
    %p87 = por %p85, %p86
    %p88 = scmp.ne.s32.totalorder %s74, %s75
    %p89 = scmp.eq.s32.totalorder %s16, 1
    %p90 = por %p88, %p89
    %p92 = scmp.ne.s32.totalorder %s75, %s91
    %p93 = scmp.eq.s32.totalorder %s16, 0
    %p94 = por %p92, %p93
    %s95 = ssub.s32 %s17, %s36
    %s96 = ssub.s32 %s18, %s32
    %s97 = sor.u32 %s95, %s96
    %p98 = scmp.eq.s32.totalorder %s97, 0
    %s100 = sadd.s32 %s99, 1
    %s101 = scalar_select %p98, %s99, %s100
    %p104 = pneg %p98
    %p105 = scmp.eq.s32.totalorder %s10, 1
    %p106 = por %p104, %p105
    %p107 = scmp.ne.s32.totalorder %s99, %s102
    %p108 = scmp.eq.s32.totalorder %s10, 0
    %p109 = por %p107, %p108
    %p110 = scmp.ne.s32.totalorder %s99, %s102
    %p111 = scmp.eq.s32.totalorder %s15, 1
    %p112 = por %p110, %p111
    %p113 = scmp.ne.s32.totalorder %s102, %s103
    %p114 = scmp.eq.s32.totalorder %s15, 0
    %p115 = por %p113, %p114
    %p116 = scmp.ne.s32.totalorder %s102, %s103
    %p117 = scmp.eq.s32.totalorder %s16, 1
    %p118 = por %p116, %p117
    %p120 = scmp.ne.s32.totalorder %s103, %s119
    %p121 = scmp.eq.s32.totalorder %s16, 0
    %p122 = por %p120, %p121
    %s123 = ssub.s32 %s17, %s36
    %s124 = ssub.s32 %s18, %s32
    %s125 = sor.u32 %s123, %s124
    %p126 = scmp.eq.s32.totalorder %s125, 0
    %s128 = sadd.s32 %s127, 1
    %s129 = scalar_select %p126, %s127, %s128
    %p132 = pneg %p126
    %p133 = scmp.eq.s32.totalorder %s10, 1
    %p134 = por %p132, %p133
    %p135 = scmp.ne.s32.totalorder %s127, %s130
    %p136 = scmp.eq.s32.totalorder %s10, 0
    %p137 = por %p135, %p136
    %p138 = scmp.ne.s32.totalorder %s127, %s130
    %p139 = scmp.eq.s32.totalorder %s15, 1
    %p140 = por %p138, %p139
    %p141 = scmp.ne.s32.totalorder %s130, %s131
    %p142 = scmp.eq.s32.totalorder %s15, 0
    %p143 = por %p141, %p142
    %p144 = scmp.ne.s32.totalorder %s130, %s131
    %p145 = scmp.eq.s32.totalorder %s16, 1
    %p146 = por %p144, %p145
    %p148 = scmp.ne.s32.totalorder %s131, %s147
    %p149 = scmp.eq.s32.totalorder %s16, 0
    %p150 = por %p148, %p149
    %p151 = scmp.le.s32.totalorder 1, %s10
    %p152 = scmp.lt.s32.totalorder %s10, 3
    %p153 = pnand %p151, %p152
    %p154 = pneg %p153
    // Predicated region
    $region9: #{var_dim12.1} parent=5 // pred_check
      _
    $region10: #{var_dim12.1} parent=5 // pred_check_branch
      %156 = sbr.rel (%p153) target = $region12
    $region11: #{var_dim12.1} parent=5 // pred_region
      %s157 = ssub.s32 %s10, 1
    $region12: #{var_dim12.1} parent=5 // pred_fallthru
      _
    %p158 = scmp.lt.s32.totalorder %s10, 2
    // Predicated region
    $region13: #{var_dim12.1} parent=5 // pred_check
      %p159 = pneg %p158
    $region14: #{var_dim12.1} parent=5 // pred_check_branch
      %161 = sbr.rel (%p159) target = $region16
    $region15: #{var_dim12.1} parent=5 // pred_region
      // Predicated region
      $region17: #{var_dim12.1} parent=15 // pred_check
        %p162 = pneg %p53
      $region18: #{var_dim12.1} parent=15 // pred_check_branch
        %164 = sbr.rel (%p162) target = $region20
      $region19: #{var_dim12.1} parent=15 // pred_region
        %p165 = scmp.lt.s32.totalorder %s17, 1
        %s166 = scalar_select %p165, %s17, 1
        %p167 = scmp.lt.s32.totalorder %s19, 0
        %s168 = scalar_select %p167, %s19, 0
        %p169 = scmp.lt.s32.totalorder %s18, 0
        %s170 = scalar_select %p169, %s18, 0
        %s171 = sadd.s32 %s170, %s168
        %s172 = sadd.s32 %s171, %s166
        %s173 = smul.addr %s172, 8
        %s174 = scalar_lea.vmem %s0, %s173
      $region20: #{var_dim12.1} parent=15 // pred_fallthru
        _
      // Predicated region
      $region21: #{var_dim12.1} parent=15 // pred_check
        %p175 = pneg %p81
      $region22: #{var_dim12.1} parent=15 // pred_check_branch
        %177 = sbr.rel (%p175) target = $region24
      $region23: #{var_dim12.1} parent=15 // pred_region
        %p178 = scmp.lt.s32.totalorder %s17, 1
        %s179 = scalar_select %p178, %s17, 1
        %p180 = scmp.lt.s32.totalorder %s18, 0
        %s181 = scalar_select %p180, %s18, 0
        %s182 = sadd.s32 %s181, %s179
        %s183 = scalar_lea.vmem %s1, %s182
      $region24: #{var_dim12.1} parent=15 // pred_fallthru
        _
    $region16: #{var_dim12.1} parent=5 // pred_fallthru
      _
    %p184 = scmp.le.s32.totalorder 1, %s10
    %p185 = scmp.lt.s32.totalorder %s10, 3
    %p186 = pnand %p184, %p185
    %p187 = pneg %p186
    // Predicated region
    $region25: #{var_dim12.1} parent=5 // pred_check
      _
    $region26: #{var_dim12.1} parent=5 // pred_check_branch
      %189 = sbr.rel (%p186) target = $region28
    $region27: #{var_dim12.1} parent=5 // pred_region
      %s190 = ssub.s32 %s10, 1
      %p191 = scmp.lt.s32.totalorder %s20, 1
      %s192 = scalar_select %p191, %s20, 1
      %p193 = scmp.lt.s32.totalorder %s22, 0
      %s194 = scalar_select %p193, %s22, 0
      %p195 = scmp.lt.s32.totalorder %s21, 0
      %s196 = scalar_select %p195, %s21, 0
      %s197 = sadd.s32 %s196, %s194
      %s198 = sadd.s32 %s197, %s192
      %s199 = smul.addr %s198, 8
      %s200 = scalar_lea.vmem %s0, %s199
      %p201 = pneg %p59
      %p202 = pneg %p56
      %p203 = scmp.lt.s32.totalorder %s20, 1
      %s204 = scalar_select %p203, %s20, 1
      %p205 = scmp.lt.s32.totalorder %s21, 0
      %s206 = scalar_select %p205, %s21, 0
      %s207 = sadd.s32 %s206, %s204
      %s208 = scalar_lea.vmem %s1, %s207
      %p209 = pneg %p87
      %p210 = pneg %p84
      %p211 = pneg %p115
      %p212 = pneg %p112
      %p213 = scmp.lt.s32.totalorder %s20, 1
      %s214 = scalar_select %p213, %s20, 1
      %p215 = scmp.lt.s32.totalorder %s21, 0
      %s216 = scalar_select %p215, %s21, 0
      %s217 = sadd.s32 %s216, %s214
      %s218 = scalar_lea.vmem %s2, %s217
      %p219 = pneg %p143
      %p220 = pneg %p140
      %p221 = scmp.lt.s32.totalorder %s20, 1
      %s222 = scalar_select %p221, %s20, 1
      %p223 = scmp.lt.s32.totalorder %s21, 0
      %s224 = scalar_select %p223, %s21, 0
      %s225 = sadd.s32 %s224, %s222
      %s226 = scalar_lea.vmem %s3, %s225
      %p227 = scmp.lt.s32.totalorder %s20, 1
      %s228 = scalar_select %p227, %s20, 1
      %p229 = scmp.lt.s32.totalorder %s22, 0
      %s230 = scalar_select %p229, %s22, 0
      %p231 = scmp.lt.s32.totalorder %s21, 0
      %s232 = scalar_select %p231, %s21, 0
      %s233 = sadd.s32 %s232, %s230
      %s234 = sadd.s32 %s233, %s228
      %s235 = smul.addr %s234, 8
      %s236 = scalar_lea.vmem %s0, %s235
      %p237 = scmp.lt.s32.totalorder %s20, 1
      %s238 = scalar_select %p237, %s20, 1
      %p239 = scmp.lt.s32.totalorder %s21, 0
      %s240 = scalar_select %p239, %s21, 0
      %s241 = sadd.s32 %s240, %s238
      %s242 = scalar_lea.vmem %s1, %s241
      %p243 = scmp.lt.s32.totalorder %s20, 1
      %s244 = scalar_select %p243, %s20, 1
      %p245 = scmp.lt.s32.totalorder %s21, 0
      %s246 = scalar_select %p245, %s21, 0
      %s247 = sadd.s32 %s246, %s244
      %s248 = scalar_lea.vmem %s2, %s247
      %p249 = scmp.lt.s32.totalorder %s20, 1
      %s250 = scalar_select %p249, %s20, 1
      %p251 = scmp.lt.s32.totalorder %s21, 0
      %s252 = scalar_select %p251, %s21, 0
      %s253 = sadd.s32 %s252, %s250
      %s254 = scalar_lea.vmem %s3, %s253
      %p255 = scmp.eq.s32.totalorder %s22, 0
      // Predicated region
      $region29: #{var_dim12.1} parent=27 // pred_check
        %p256 = pneg %p255
      $region30: #{var_dim12.1} parent=27 // pred_check_branch
        %258 = sbr.rel (%p256) target = $region32
      $region31: #{var_dim12.1} parent=27 // pred_region
        %259 = vst [vmem:[%s248] sm:$0x1] 0.0
        %260 = vst [vmem:[%s254] sm:$0x1] 0.0
      $region32: #{var_dim12.1} parent=27 // pred_fallthru
        _
      %v261 = vld [vmem:[%s236] sm:$0xff]
      %v262 = vld [vmem:[%s242] sm:$0x1]
      %v264 = vlaneseq
      %v265 = vshrl.u32 %v264, 7
      %v266 = vsub.s32 0, %v265
      %v267 = vrot.slane %v262, %v266
      %v269 = vsub.f32 %v261, %v267
      %v270 = vld [vmem:[%s248] sm:$0x1]
      %v271 = vrot.slane %v269, 4
      %v272 = vadd.f32 %v269, %v271
      %v273 = vrot.slane %v272, 2
      %v274 = vadd.f32 %v272, %v273
      %v275 = vrot.slane %v274, 1
      %v276 = vadd.f32 %v274, %v275
      %v277 = vadd.f32 %v270, %v276
      %278 = vst [vmem:[%s248] sm:$0x1] %v277
      %v279 = vld [vmem:[%s254] sm:$0x1]
      %v280 = vmul.f32 %v269, %v269
      %v281 = vrot.slane %v280, 4
      %v282 = vadd.f32 %v280, %v281
      %v283 = vrot.slane %v282, 2
      %v284 = vadd.f32 %v282, %v283
      %v285 = vrot.slane %v284, 1
      %v286 = vadd.f32 %v284, %v285
      %v287 = vadd.f32 %v279, %v286
      %288 = vst [vmem:[%s254] sm:$0x1] %v287
      %p289 = scmp.lt.s32.totalorder %s20, 1
      %s290 = scalar_select %p289, %s20, 1
      %p291 = scmp.lt.s32.totalorder %s21, 0
      %s292 = scalar_select %p291, %s21, 0
      %s293 = sadd.s32 %s292, %s290
      %s294 = scalar_lea.vmem %s2, %s293
      %p295 = scmp.lt.s32.totalorder %s20, 1
      %s296 = scalar_select %p295, %s20, 1
      %p297 = scmp.lt.s32.totalorder %s21, 0
      %s298 = scalar_select %p297, %s21, 0
      %s299 = sadd.s32 %s298, %s296
      %s300 = scalar_lea.vmem %s3, %s299
      // Predicated region
      $region33: #{var_dim12.1} parent=27 // pred_check
        %p301 = pneg %p112
      $region34: #{var_dim12.1} parent=27 // pred_check_branch
        %303 = sbr.rel (%p301) target = $region36
      $region35: #{var_dim12.1} parent=27 // pred_region
        _
      $region36: #{var_dim12.1} parent=27 // pred_fallthru
        _
      // Predicated region
      $region37: #{var_dim12.1} parent=27 // pred_check
        %p304 = pneg %p140
      $region38: #{var_dim12.1} parent=27 // pred_check_branch
        %306 = sbr.rel (%p304) target = $region40
      $region39: #{var_dim12.1} parent=27 // pred_region
        _
      $region40: #{var_dim12.1} parent=27 // pred_fallthru
        _
    $region28: #{var_dim12.1} parent=5 // pred_fallthru
      _
    %p307 = scmp.le.s32.totalorder 2, %s10
    // Predicated region
    $region41: #{var_dim12.1} parent=5 // pred_check
      %p308 = pneg %p307
    $region42: #{var_dim12.1} parent=5 // pred_check_branch
      %310 = sbr.rel (%p308) target = $region44
    $region43: #{var_dim12.1} parent=5 // pred_region
      %s311 = ssub.s32 %s10, 2
      // Predicated region
      $region45: #{var_dim12.1} parent=43 // pred_check
        %p312 = pneg %p118
      $region46: #{var_dim12.1} parent=43 // pred_check_branch
        %314 = sbr.rel (%p312) target = $region48
      $region47: #{var_dim12.1} parent=43 // pred_region
        %p315 = scmp.lt.s32.totalorder %s23, 1
        %s316 = scalar_select %p315, %s23, 1
        %p317 = scmp.lt.s32.totalorder %s24, 0
        %s318 = scalar_select %p317, %s24, 0
        %s319 = sadd.s32 %s318, %s316
        %s320 = scalar_lea.vmem %s2, %s319
      $region48: #{var_dim12.1} parent=43 // pred_fallthru
        _
      // Predicated region
      $region49: #{var_dim12.1} parent=43 // pred_check
        %p321 = pneg %p146
      $region50: #{var_dim12.1} parent=43 // pred_check_branch
        %323 = sbr.rel (%p321) target = $region52
      $region51: #{var_dim12.1} parent=43 // pred_region
        %p324 = scmp.lt.s32.totalorder %s23, 1
        %s325 = scalar_select %p324, %s23, 1
        %p326 = scmp.lt.s32.totalorder %s24, 0
        %s327 = scalar_select %p326, %s24, 0
        %s328 = sadd.s32 %s327, %s325
        %s329 = scalar_lea.vmem %s3, %s328
      $region52: #{var_dim12.1} parent=43 // pred_fallthru
        _
    $region44: #{var_dim12.1} parent=5 // pred_fallthru
      _
  $region6: #{var_dim12.1} parent=0 // loop_footer
    %s14 = sadd.s32 1, %s10
  $region7: #{var_dim12.1} parent=0 // loop_footer_branch
    %9 = sbr.rel target = $region3
  $region8: #{var_dim12.1} parent=0 // loop_exit
    _

</llo_original>
